<compile_context>
chip_gen: v7x
topology: tpu7x:2x2x1
jax: 0.10.0
libtpu: 0.0.40
codegen_flags: <defaults>
</compile_context>

<pallas_src>
import functools

import jax
import jax.numpy as jnp
from jax.experimental import pallas as pl
from jax.experimental.pallas import tpu as pltpu

LANE = 128          # lane width; output slab is padded to this many columns
TB_MAX = 2048       # batch-tile ceiling, safe under v7x 64 MiB VMEM (f32, x2 buffers)


def mlp_kernel(x_ref,
               w1_ref, b1_ref,
               w2_ref, b2_ref,
               w3_ref, b3_ref,
               w4_ref, b4_ref,
               o_ref):
    """One batch tile: 4 matmuls + bias + 2 ReLU + sigmoid, all in VMEM."""
    x = x_ref[...]                                                     # (TB, in)

    h = jnp.dot(x, w1_ref[...], preferred_element_type=jnp.float32) + b1_ref[...]
    h = jnp.maximum(h, 0.0)                                            # ReLU

    h = jnp.dot(h, w2_ref[...], preferred_element_type=jnp.float32) + b2_ref[...]
    h = jnp.maximum(h, 0.0)                                            # ReLU

    h = jnp.dot(h, w3_ref[...], preferred_element_type=jnp.float32) + b3_ref[...]

    z = jnp.dot(h, w4_ref[...], preferred_element_type=jnp.float32) + b4_ref[...]
    o_ref[...] = jax.nn.sigmoid(z).astype(o_ref.dtype)                 # (TB, 128)


def prepare_params(params):
    """One-time layout prep: transpose to (in, out), reshape biases to (1, out),
    and zero-pad the final layer to LANE output columns for lane-dense stores."""
    (w1, b1), (w2, b2), (w3, b3), (w4, b4) = (params["l1"], params["l2"],
                                              params["l3"], params["l4"])
    out_dim, last_in = w4.shape
    pad = LANE - out_dim
    w4t = jnp.pad(w4.T, ((0, 0), (0, pad)))              # (16, 128)
    b4p = jnp.pad(b4.reshape(1, -1), ((0, 0), (0, pad))) # (1, 128)
    prepped = (w1.T, b1.reshape(1, -1),
               w2.T, b2.reshape(1, -1),
               w3.T, b3.reshape(1, -1),
               w4t, b4p)
    return prepped, out_dim


@functools.partial(jax.jit, static_argnames=("out_dim",))
def mymodel_forward(x, prepped, out_dim):
    """x: (B, input_dim) float32; prepped: output of prepare_params."""
    B, in_dim = x.shape

    # Batch tile: whole batch if small, else TB_MAX rows per grid step.
    tb = B if B <= TB_MAX else TB_MAX
    grid = (pl.cdiv(B, tb),)

    # Weights / biases: full-array blocks with constant index_map -> loaded
    # once, resident in VMEM across the whole batch grid.
    const_specs = [pl.BlockSpec(p.shape, lambda i: (0, 0)) for p in prepped]

    out_padded = pl.pallas_call(
        mlp_kernel,
        out_shape=jax.ShapeDtypeStruct((B, LANE), jnp.float32),
        grid=grid,
        in_specs=[pl.BlockSpec((tb, in_dim), lambda i: (i, 0))] + const_specs,
        out_specs=pl.BlockSpec((tb, LANE), lambda i: (i, 0)),
        compiler_params=pltpu.CompilerParams(
            dimension_semantics=("parallel",)),
    )(x, *prepped)

    return out_padded[:, :out_dim]


def init_params(key, input_dim, output_dim):
    """Deterministic PyTorch-style uniform(-1/sqrt(fan_in), 1/sqrt(fan_in)) init."""
    dims = [(input_dim, 64), (64, 32), (32, 16), (16, output_dim)]
    names = ["l1", "l2", "l3", "l4"]
    params = {}
    for name, (fan_in, fan_out) in zip(names, dims):
        key, kw, kb = jax.random.split(key, 3)
        bound = 1.0 / jnp.sqrt(jnp.float32(fan_in))
        W = jax.random.uniform(kw, (fan_out, fan_in), jnp.float32, -bound, bound)
        b = jax.random.uniform(kb, (fan_out,), jnp.float32, -bound, bound)
        params[name] = (W, b)
    return params


def reference_forward(x, params):
    """Pure-JAX reference (PyTorch semantics) for correctness checking."""
    h = x
    for name, act in (("l1", True), ("l2", True), ("l3", False), ("l4", False)):
        W, b = params[name]
        h = h @ W.T + b
        if act:
            h = jnp.maximum(h, 0.0)
    return jax.nn.sigmoid(h)


if __name__ == "__main__":
    key = jax.random.PRNGKey(0)
    batch, input_dim, output_dim = 8, 8, 1   # Titanic-style tabular features

    kx, kp = jax.random.split(key)
    x = jax.random.normal(kx, (batch, input_dim), jnp.float32)
    params = init_params(kp, input_dim, output_dim)

    prepped, out_dim = prepare_params(params)
    out = mymodel_forward(x, prepped, out_dim)
    jax.block_until_ready(out)

    assert out.shape == (batch, output_dim)
    assert bool(jnp.all((out >= 0.0) & (out <= 1.0)))          # sigmoid range
    ref = reference_forward(x, params)
    assert bool(jnp.allclose(out, ref, atol=1e-5, rtol=1e-5))  # numerics vs ref
    print("KERNEL_OK")
</pallas_src>

<mosaic_0001>
module attributes {stable_mosaic.version = 11 : i64} {
  func.func @mlp_kernel(%arg0: i32, %arg1: memref<8x8xf32, #tpu.memory_space<vmem>>, %arg2: memref<8x64xf32, #tpu.memory_space<vmem>>, %arg3: memref<1x64xf32, #tpu.memory_space<vmem>>, %arg4: memref<64x32xf32, #tpu.memory_space<vmem>>, %arg5: memref<1x32xf32, #tpu.memory_space<vmem>>, %arg6: memref<32x16xf32, #tpu.memory_space<vmem>>, %arg7: memref<1x16xf32, #tpu.memory_space<vmem>>, %arg8: memref<16x128xf32, #tpu.memory_space<vmem>>, %arg9: memref<1x128xf32, #tpu.memory_space<vmem>>, %arg10: memref<8x128xf32, #tpu.memory_space<vmem>>) attributes {dimension_semantics = [#tpu.dimension_semantics<parallel>], iteration_bounds = array<i64: 1>, scalar_prefetch = 0 : i64, scratch_operands = 0 : i64, tpu.core_type = #tpu.core_type<tc>, window_params = [{transform_indices = @transform_0, window_bounds = array<i64: 8, 8>}, {pipeline_mode = #tpu.pipeline_mode<synchronous>, transform_indices = @transform_1, window_bounds = array<i64: 8, 64>}, {pipeline_mode = #tpu.pipeline_mode<synchronous>, transform_indices = @transform_2, window_bounds = array<i64: 1, 64>}, {pipeline_mode = #tpu.pipeline_mode<synchronous>, transform_indices = @transform_3, window_bounds = array<i64: 64, 32>}, {pipeline_mode = #tpu.pipeline_mode<synchronous>, transform_indices = @transform_4, window_bounds = array<i64: 1, 32>}, {pipeline_mode = #tpu.pipeline_mode<synchronous>, transform_indices = @transform_5, window_bounds = array<i64: 32, 16>}, {pipeline_mode = #tpu.pipeline_mode<synchronous>, transform_indices = @transform_6, window_bounds = array<i64: 1, 16>}, {pipeline_mode = #tpu.pipeline_mode<synchronous>, transform_indices = @transform_7, window_bounds = array<i64: 16, 128>}, {pipeline_mode = #tpu.pipeline_mode<synchronous>, transform_indices = @transform_8, window_bounds = array<i64: 1, 128>}, {transform_indices = @transform_9, window_bounds = array<i64: 8, 128>}]} {
    %c0 = arith.constant 0 : index
    %c0_0 = arith.constant 0 : index
    %0 = vector.load %arg1[%c0, %c0_0] : memref<8x8xf32, #tpu.memory_space<vmem>>, vector<8x8xf32>
    %c0_1 = arith.constant 0 : index
    %c0_2 = arith.constant 0 : index
    %1 = vector.load %arg2[%c0_1, %c0_2] : memref<8x64xf32, #tpu.memory_space<vmem>>, vector<8x64xf32>
    %cst = arith.constant dense<0.000000e+00> : vector<8x64xf32>
    %2 = tpu.matmul %0, %1, %cst {dimension_numbers = #tpu.dot_dimension_numbers<[1], [0], [0], [1], [0, 0, 1, 1], [], []>} : vector<8x8xf32>, vector<8x64xf32>, vector<8x64xf32> -> vector<8x64xf32>
    %c0_3 = arith.constant 0 : index
    %c0_4 = arith.constant 0 : index
    %3 = vector.load %arg3[%c0_3, %c0_4] : memref<1x64xf32, #tpu.memory_space<vmem>>, vector<1x64xf32>
    %4 = vector.broadcast %3 : vector<1x64xf32> to vector<8x64xf32>
    %5 = arith.addf %2, %4 : vector<8x64xf32>
    %cst_5 = arith.constant 0.000000e+00 : f32
    %6 = vector.broadcast %cst_5 : f32 to vector<8x64xf32>
    %7 = arith.maximumf %5, %6 : vector<8x64xf32>
    %c0_6 = arith.constant 0 : index
    %c0_7 = arith.constant 0 : index
    %8 = vector.load %arg4[%c0_6, %c0_7] : memref<64x32xf32, #tpu.memory_space<vmem>>, vector<64x32xf32>
    %cst_8 = arith.constant dense<0.000000e+00> : vector<8x32xf32>
    %9 = tpu.matmul %7, %8, %cst_8 {dimension_numbers = #tpu.dot_dimension_numbers<[1], [0], [0], [1], [0, 0, 1, 1], [], []>} : vector<8x64xf32>, vector<64x32xf32>, vector<8x32xf32> -> vector<8x32xf32>
    %c0_9 = arith.constant 0 : index
    %c0_10 = arith.constant 0 : index
    %10 = vector.load %arg5[%c0_9, %c0_10] : memref<1x32xf32, #tpu.memory_space<vmem>>, vector<1x32xf32>
    %11 = vector.broadcast %10 : vector<1x32xf32> to vector<8x32xf32>
    %12 = arith.addf %9, %11 : vector<8x32xf32>
    %cst_11 = arith.constant 0.000000e+00 : f32
    %13 = vector.broadcast %cst_11 : f32 to vector<8x32xf32>
    %14 = arith.maximumf %12, %13 : vector<8x32xf32>
    %c0_12 = arith.constant 0 : index
    %c0_13 = arith.constant 0 : index
    %15 = vector.load %arg6[%c0_12, %c0_13] : memref<32x16xf32, #tpu.memory_space<vmem>>, vector<32x16xf32>
    %cst_14 = arith.constant dense<0.000000e+00> : vector<8x16xf32>
    %16 = tpu.matmul %14, %15, %cst_14 {dimension_numbers = #tpu.dot_dimension_numbers<[1], [0], [0], [1], [0, 0, 1, 1], [], []>} : vector<8x32xf32>, vector<32x16xf32>, vector<8x16xf32> -> vector<8x16xf32>
    %c0_15 = arith.constant 0 : index
    %c0_16 = arith.constant 0 : index
    %17 = vector.load %arg7[%c0_15, %c0_16] : memref<1x16xf32, #tpu.memory_space<vmem>>, vector<1x16xf32>
    %18 = vector.broadcast %17 : vector<1x16xf32> to vector<8x16xf32>
    %19 = arith.addf %16, %18 : vector<8x16xf32>
    %c0_17 = arith.constant 0 : index
    %c0_18 = arith.constant 0 : index
    %20 = vector.load %arg8[%c0_17, %c0_18] : memref<16x128xf32, #tpu.memory_space<vmem>>, vector<16x128xf32>
    %cst_19 = arith.constant dense<0.000000e+00> : vector<8x128xf32>
    %21 = tpu.matmul %19, %20, %cst_19 {dimension_numbers = #tpu.dot_dimension_numbers<[1], [0], [0], [1], [0, 0, 1, 1], [], []>} : vector<8x16xf32>, vector<16x128xf32>, vector<8x128xf32> -> vector<8x128xf32>
    %c0_20 = arith.constant 0 : index
    %c0_21 = arith.constant 0 : index
    %22 = vector.load %arg9[%c0_20, %c0_21] : memref<1x128xf32, #tpu.memory_space<vmem>>, vector<1x128xf32>
    %23 = vector.broadcast %22 : vector<1x128xf32> to vector<8x128xf32>
    %24 = arith.addf %21, %23 : vector<8x128xf32>
    %25 = arith.negf %24 : vector<8x128xf32>
    %26 = math.exp %25 : vector<8x128xf32>
    %cst_22 = arith.constant 1.000000e+00 : f32
    %27 = vector.broadcast %cst_22 : f32 to vector<8x128xf32>
    %28 = arith.addf %27, %26 : vector<8x128xf32>
    %29 = arith.divf %27, %28 : vector<8x128xf32>
    %c0_23 = arith.constant 0 : index
    %c0_24 = arith.constant 0 : index
    %30 = vector.load %arg10[%c0_23, %c0_24] : memref<8x128xf32, #tpu.memory_space<vmem>>, vector<8x128xf32>
    tpu.vector_store %arg10[%c0_23, %c0_24], %29 {strides = array<i32>} : memref<8x128xf32, #tpu.memory_space<vmem>>, vector<8x128xf32>,
    return
  }
  func.func @transform_0(%arg0: i32) -> (i32, i32) {
    %c0_i32 = arith.constant 0 : i32
    %c0_i32_0 = arith.constant 0 : i32
    return %arg0, %c0_i32 : i32, i32
  }
  func.func @transform_1(%arg0: i32) -> (i32, i32) {
    %c0_i32 = arith.constant 0 : i32
    %c0_i32_0 = arith.constant 0 : i32
    %c0_i32_1 = arith.constant 0 : i32
    return %c0_i32, %c0_i32_0 : i32, i32
  }
  func.func @transform_2(%arg0: i32) -> (i32, i32) {
    %c0_i32 = arith.constant 0 : i32
    %c0_i32_0 = arith.constant 0 : i32
    %c0_i32_1 = arith.constant 0 : i32
    return %c0_i32, %c0_i32_0 : i32, i32
  }
  func.func @transform_3(%arg0: i32) -> (i32, i32) {
    %c0_i32 = arith.constant 0 : i32
    %c0_i32_0 = arith.constant 0 : i32
    %c0_i32_1 = arith.constant 0 : i32
    return %c0_i32, %c0_i32_0 : i32, i32
  }
  func.func @transform_4(%arg0: i32) -> (i32, i32) {
    %c0_i32 = arith.constant 0 : i32
    %c0_i32_0 = arith.constant 0 : i32
    %c0_i32_1 = arith.constant 0 : i32
    return %c0_i32, %c0_i32_0 : i32, i32
  }
  func.func @transform_5(%arg0: i32) -> (i32, i32) {
    %c0_i32 = arith.constant 0 : i32
    %c0_i32_0 = arith.constant 0 : i32
    %c0_i32_1 = arith.constant 0 : i32
    return %c0_i32, %c0_i32_0 : i32, i32
  }
  func.func @transform_6(%arg0: i32) -> (i32, i32) {
    %c0_i32 = arith.constant 0 : i32
    %c0_i32_0 = arith.constant 0 : i32
    %c0_i32_1 = arith.constant 0 : i32
    return %c0_i32, %c0_i32_0 : i32, i32
  }
  func.func @transform_7(%arg0: i32) -> (i32, i32) {
    %c0_i32 = arith.constant 0 : i32
    %c0_i32_0 = arith.constant 0 : i32
    %c0_i32_1 = arith.constant 0 : i32
    return %c0_i32, %c0_i32_0 : i32, i32
  }
  func.func @transform_8(%arg0: i32) -> (i32, i32) {
    %c0_i32 = arith.constant 0 : i32
    %c0_i32_0 = arith.constant 0 : i32
    %c0_i32_1 = arith.constant 0 : i32
    return %c0_i32, %c0_i32_0 : i32, i32
  }
  func.func @transform_9(%arg0: i32) -> (i32, i32) {
    %c0_i32 = arith.constant 0 : i32
    %c0_i32_0 = arith.constant 0 : i32
    return %arg0, %c0_i32 : i32, i32
  }
}

</mosaic_0001>

<llo_original>
// kernel: mymodel_forward.1
$region0: #{mymodel_forward.1}
  #allocation0 [shape = 'u32[]', space=smem, size = 0x4, offset = 0x4, fixed_abs, tag = 'smem constant byte address 0x4 - core index']
  #allocation1 [shape = 'u32[144,128]{1,0:T(1,128)}', space=vmem, size = 0x12000, scoped, tag = 'internal scratch']
  %s0 = inlined_call_operand.vmem [shape: f32[8,8], index: 0, kind: input, shape index: {}]
  %s1 = inlined_call_operand.vmem [shape: f32[8,64], index: 1, kind: input, shape index: {}]
  %s2 = inlined_call_operand.vmem [shape: f32[1,64], index: 2, kind: input, shape index: {}]
  %s3 = inlined_call_operand.vmem [shape: f32[64,32], index: 3, kind: input, shape index: {}]
  %s4 = inlined_call_operand.vmem [shape: f32[1,32], index: 4, kind: input, shape index: {}]
  %s5 = inlined_call_operand.vmem [shape: f32[32,16], index: 5, kind: input, shape index: {}]
  %s6 = inlined_call_operand.vmem [shape: f32[1,16], index: 6, kind: input, shape index: {}]
  %s7 = inlined_call_operand.vmem [shape: f32[16,128], index: 7, kind: input, shape index: {}]
  %s8 = inlined_call_operand.vmem [shape: f32[1,128], index: 8, kind: input, shape index: {}]
  %s9 = inlined_call_operand.vmem [shape: f32[8,128], index: 9, kind: output, shape index: {}]
  %s10 = sld [smem:[#allocation0]]
  $region46: #{mymodel_forward.1} parent=0
    _
  %s12 = ssub.s32 1, %s10
  %s13 = scalar_select 0, %s12, %s10
  // Predicated region
  $region2: #{mymodel_forward.1} parent=0 // pred_check
    _
  $region3: #{mymodel_forward.1} parent=0 // pred_check_branch
    %15 = sbr.rel (0) target = $region5
  $region4: #{mymodel_forward.1} parent=0 // pred_region
    _
  $region5: #{mymodel_forward.1} parent=0 // pred_fallthru
    _
  // Predicated region
  $region6: #{mymodel_forward.1} parent=0 // pred_check
    _
  $region7: #{mymodel_forward.1} parent=0 // pred_check_branch
    %17 = sbr.rel (0) target = $region9
  $region8: #{mymodel_forward.1} parent=0 // pred_region
    _
  $region9: #{mymodel_forward.1} parent=0 // pred_fallthru
    _
  // Predicated region
  $region10: #{mymodel_forward.1} parent=0 // pred_check
    _
  $region11: #{mymodel_forward.1} parent=0 // pred_check_branch
    %19 = sbr.rel (0) target = $region13
  $region12: #{mymodel_forward.1} parent=0 // pred_region
    _
  $region13: #{mymodel_forward.1} parent=0 // pred_fallthru
    _
  // Predicated region
  $region14: #{mymodel_forward.1} parent=0 // pred_check
    _
  $region15: #{mymodel_forward.1} parent=0 // pred_check_branch
    %21 = sbr.rel (0) target = $region17
  $region16: #{mymodel_forward.1} parent=0 // pred_region
    _
  $region17: #{mymodel_forward.1} parent=0 // pred_fallthru
    _
  // Predicated region
  $region18: #{mymodel_forward.1} parent=0 // pred_check
    _
  $region19: #{mymodel_forward.1} parent=0 // pred_check_branch
    %23 = sbr.rel (0) target = $region21
  $region20: #{mymodel_forward.1} parent=0 // pred_region
    _
  $region21: #{mymodel_forward.1} parent=0 // pred_fallthru
    _
  // Predicated region
  $region22: #{mymodel_forward.1} parent=0 // pred_check
    _
  $region23: #{mymodel_forward.1} parent=0 // pred_check_branch
    %25 = sbr.rel (0) target = $region25
  $region24: #{mymodel_forward.1} parent=0 // pred_region
    _
  $region25: #{mymodel_forward.1} parent=0 // pred_fallthru
    _
  // Predicated region
  $region26: #{mymodel_forward.1} parent=0 // pred_check
    _
  $region27: #{mymodel_forward.1} parent=0 // pred_check_branch
    %27 = sbr.rel (0) target = $region29
  $region28: #{mymodel_forward.1} parent=0 // pred_region
    _
  $region29: #{mymodel_forward.1} parent=0 // pred_fallthru
    _
  // Predicated region
  $region30: #{mymodel_forward.1} parent=0 // pred_check
    _
  $region31: #{mymodel_forward.1} parent=0 // pred_check_branch
    %29 = sbr.rel (0) target = $region33
  $region32: #{mymodel_forward.1} parent=0 // pred_region
    _
  $region33: #{mymodel_forward.1} parent=0 // pred_fallthru
    _
  // Predicated region
  $region34: #{mymodel_forward.1} parent=0 // pred_check
    _
  $region35: #{mymodel_forward.1} parent=0 // pred_check_branch
    %31 = sbr.rel (0) target = $region37
  $region36: #{mymodel_forward.1} parent=0 // pred_region
    _
  $region37: #{mymodel_forward.1} parent=0 // pred_fallthru
    _
  %v32 = vld [vmem:[%s0] sm:$0xff]
  %v33 = vld [vmem:[%s1] sm:$0xff]
  %v34 = vld [vmem:[%s2] sm:$0x1]
  %v36 = vlaneseq
  %v37 = vshrl.u32 %v36, 7
  %v38 = vsub.s32 0, %v37
  %v39 = vrot.slane %v34, %v38
  %vm41 = vcmask 64512
  %v43 = vsel %vm41, %v32, 0
  %45 = vmatprep.subr.mxu0 0.0
  %46 = vmatpush1.msra.mxu0 %v33
  %47 = vmatprep.subr.mxu0 0.0
  %48 = vmatpush1.msra.mxu0 0.0
  %49 = vmatprep.subr.mxu0 0.0
  %50 = vmatpush1.msra.mxu0 0.0
  %51 = vmatprep.subr.mxu0 0.0
  %52 = vmatpush1.msra.mxu0 0.0
  %53 = vmatprep.subr.mxu0 0.0
  %54 = vmatpush1.msra.mxu0 0.0
  %55 = vmatprep.subr.mxu0 0.0
  %56 = vmatpush1.msra.mxu0 0.0
  %57 = vmatprep.subr.mxu0 0.0
  %58 = vmatpush1.msra.mxu0 0.0
  %59 = vmatprep.subr.mxu0 0.0
  %60 = vmatpush1.msra.mxu0 0.0
  %61 = vmatprep.subr.mxu0 0.0
  %62 = vmatpush1.msra.mxu0 0.0
  %63 = vmatprep.subr.mxu0 0.0
  %64 = vmatpush1.msra.mxu0 0.0
  %65 = vmatprep.subr.mxu0 0.0
  %66 = vmatpush1.msra.mxu0 0.0
  %67 = vmatprep.subr.mxu0 0.0
  %68 = vmatpush1.msra.mxu0 0.0
  %69 = vmatprep.subr.mxu0 0.0
  %70 = vmatpush1.msra.mxu0 0.0
  %71 = vmatprep.subr.mxu0 0.0
  %72 = vmatpush1.msra.mxu0 0.0
  %73 = vmatprep.subr.mxu0 0.0
  %74 = vmatpush1.msra.mxu0 0.0
  %75 = vmatprep.subr.mxu0 0.0
  %76 = vmatpush1.msra.mxu0 0.0
  %77 = vmatprep.subr.mxu0 0.0
  %78 = vmatpush1.msra.mxu0 0.0
  %79 = vmatprep.subr.mxu0 0.0
  %80 = vmatpush1.msra.mxu0 0.0
  %81 = vmatprep.subr.mxu0 0.0
  %82 = vmatpush1.msra.mxu0 0.0
  %83 = vmatprep.subr.mxu0 0.0
  %84 = vmatpush1.msra.mxu0 0.0
  %85 = vmatprep.subr.mxu0 0.0
  %86 = vmatpush1.msra.mxu0 0.0
  %87 = vmatprep.subr.mxu0 0.0
  %88 = vmatpush1.msra.mxu0 0.0
  %89 = vmatprep.subr.mxu0 0.0
  %90 = vmatpush1.msra.mxu0 0.0
  %91 = vmatprep.subr.mxu0 0.0
  %92 = vmatpush1.msra.mxu0 0.0
  %93 = vmatprep.subr.mxu0 0.0
  %94 = vmatpush1.msra.mxu0 0.0
  %95 = vmatprep.subr.mxu0 0.0
  %96 = vmatpush1.msra.mxu0 0.0
  %97 = vmatprep.subr.mxu0 0.0
  %98 = vmatpush1.msra.mxu0 0.0
  %99 = vmatprep.subr.mxu0 0.0
  %100 = vmatpush1.msra.mxu0 0.0
  %101 = vmatprep.subr.mxu0 0.0
  %102 = vmatpush1.msra.mxu0 0.0
  %103 = vmatprep.subr.mxu0 0.0
  %104 = vmatpush1.msra.mxu0 0.0
  %105 = vmatprep.subr.mxu0 0.0
  %106 = vmatpush1.msra.mxu0 0.0
  %107 = vmatprep.subr.mxu0 0.0
  %108 = vmatpush1.msra.mxu0 0.0
  %109 = vmatprep.mubr.f32.mxu0 0.0
  %110 = vmatmul.mubr.f32.gmra.mrb[0].mxu0 %v43
  %v111 = vpop.f32.mrb[0].mxu0
  %v112 = vadd.f32 %v39, %v111
  %v113 = vpop.f32.mrb[0].mxu0
  %114 = vdwg.mxu0
  %v115 = vmax.f32 %v112, 0.0
  %v116 = vld [vmem:[%s3] sm:$0xff]
  %v117 = vld [vmem:[%s3 + $0x8] sm:$0xff]
  %v118 = vld [vmem:[%s3 + $0x10] sm:$0xff]
  %v119 = vld [vmem:[%s3 + $0x18] sm:$0xff]
  %v120 = vld [vmem:[%s3 + $0x20] sm:$0xff]
  %v121 = vld [vmem:[%s3 + $0x28] sm:$0xff]
  %v122 = vld [vmem:[%s3 + $0x30] sm:$0xff]
  %v123 = vld [vmem:[%s3 + $0x38] sm:$0xff]
  %v124 = vld [vmem:[%s4] sm:$0x1]
  %v126 = vlaneseq
  %v127 = vshrl.u32 %v126, 7
  %v128 = vsub.s32 0, %v127
  %v129 = vrot.slane %v124, %v128
  %vm131 = vcmask 523264
  %v133 = vsel %vm131, %v115, 0
  %135 = vmatprep.subr.mxu0 0.0
  %136 = vmatpush1.msra.mxu0 %v116
  %137 = vmatprep.subr.mxu0 0.0
  %138 = vmatpush1.msra.mxu0 %v117
  %139 = vmatprep.subr.mxu0 0.0
  %140 = vmatpush1.msra.mxu0 %v118
  %141 = vmatprep.subr.mxu0 0.0
  %142 = vmatpush1.msra.mxu0 %v119
  %143 = vmatprep.subr.mxu0 0.0
  %144 = vmatpush1.msra.mxu0 %v120
  %145 = vmatprep.subr.mxu0 0.0
  %146 = vmatpush1.msra.mxu0 %v121
  %147 = vmatprep.subr.mxu0 0.0
  %148 = vmatpush1.msra.mxu0 %v122
  %149 = vmatprep.subr.mxu0 0.0
  %150 = vmatpush1.msra.mxu0 %v123
  %151 = vmatprep.subr.mxu0 0.0
  %152 = vmatpush1.msra.mxu0 0.0
  %153 = vmatprep.subr.mxu0 0.0
  %154 = vmatpush1.msra.mxu0 0.0
  %155 = vmatprep.subr.mxu0 0.0
  %156 = vmatpush1.msra.mxu0 0.0
  %157 = vmatprep.subr.mxu0 0.0
  %158 = vmatpush1.msra.mxu0 0.0
  %159 = vmatprep.subr.mxu0 0.0
  %160 = vmatpush1.msra.mxu0 0.0
  %161 = vmatprep.subr.mxu0 0.0
  %162 = vmatpush1.msra.mxu0 0.0
  %163 = vmatprep.subr.mxu0 0.0
  %164 = vmatpush1.msra.mxu0 0.0
  %165 = vmatprep.subr.mxu0 0.0
  %166 = vmatpush1.msra.mxu0 0.0
  %167 = vmatprep.subr.mxu0 0.0
  %168 = vmatpush1.msra.mxu0 0.0
  %169 = vmatprep.subr.mxu0 0.0
  %170 = vmatpush1.msra.mxu0 0.0
  %171 = vmatprep.subr.mxu0 0.0
  %172 = vmatpush1.msra.mxu0 0.0
  %173 = vmatprep.subr.mxu0 0.0
  %174 = vmatpush1.msra.mxu0 0.0
  %175 = vmatprep.subr.mxu0 0.0
  %176 = vmatpush1.msra.mxu0 0.0
  %177 = vmatprep.subr.mxu0 0.0
  %178 = vmatpush1.msra.mxu0 0.0
  %179 = vmatprep.subr.mxu0 0.0
  %180 = vmatpush1.msra.mxu0 0.0
  %181 = vmatprep.subr.mxu0 0.0
  %182 = vmatpush1.msra.mxu0 0.0
  %183 = vmatprep.subr.mxu0 0.0
  %184 = vmatpush1.msra.mxu0 0.0
  %185 = vmatprep.subr.mxu0 0.0
  %186 = vmatpush1.msra.mxu0 0.0
  %187 = vmatprep.subr.mxu0 0.0
  %188 = vmatpush1.msra.mxu0 0.0
  %189 = vmatprep.subr.mxu0 0.0
  %190 = vmatpush1.msra.mxu0 0.0
  %191 = vmatprep.subr.mxu0 0.0
  %192 = vmatpush1.msra.mxu0 0.0
  %193 = vmatprep.subr.mxu0 0.0
  %194 = vmatpush1.msra.mxu0 0.0
  %195 = vmatprep.subr.mxu0 0.0
  %196 = vmatpush1.msra.mxu0 0.0
  %197 = vmatprep.subr.mxu0 0.0
  %198 = vmatpush1.msra.mxu0 0.0
  %199 = vmatprep.mubr.f32.mxu0 0.0
  %200 = vmatmul.mubr.f32.gmra.mrb[0].mxu0 %v133
  %v201 = vpop.f32.mrb[0].mxu0
  %v202 = vadd.f32 %v129, %v201
  %v203 = vpop.f32.mrb[0].mxu0
  %204 = vdwg.mxu0
  %v205 = vmax.f32 %v202, 0.0
  %v206 = vld [vmem:[%s5] sm:$0xff]
  %v207 = vld [vmem:[%s5 + $0x8] sm:$0xff]
  %v208 = vld [vmem:[%s5 + $0x10] sm:$0xff]
  %v209 = vld [vmem:[%s5 + $0x18] sm:$0xff]
  %v210 = vld [vmem:[%s6] sm:$0x1]
  %v212 = vlaneseq
  %v213 = vshrl.u32 %v212, 7
  %v214 = vsub.s32 0, %v213
  %v215 = vrot.slane %v210, %v214
  %vm217 = vcmask 261120
  %v219 = vsel %vm217, %v205, 0
  %221 = vmatprep.subr.mxu0 0.0
  %222 = vmatpush1.msra.mxu0 %v206
  %223 = vmatprep.subr.mxu0 0.0
  %224 = vmatpush1.msra.mxu0 %v207
  %225 = vmatprep.subr.mxu0 0.0
  %226 = vmatpush1.msra.mxu0 %v208
  %227 = vmatprep.subr.mxu0 0.0
  %228 = vmatpush1.msra.mxu0 %v209
  %229 = vmatprep.subr.mxu0 0.0
  %230 = vmatpush1.msra.mxu0 0.0
  %231 = vmatprep.subr.mxu0 0.0
  %232 = vmatpush1.msra.mxu0 0.0
  %233 = vmatprep.subr.mxu0 0.0
  %234 = vmatpush1.msra.mxu0 0.0
  %235 = vmatprep.subr.mxu0 0.0
  %236 = vmatpush1.msra.mxu0 0.0
  %237 = vmatprep.subr.mxu0 0.0
  %238 = vmatpush1.msra.mxu0 0.0
  %239 = vmatprep.subr.mxu0 0.0
  %240 = vmatpush1.msra.mxu0 0.0
  %241 = vmatprep.subr.mxu0 0.0
  %242 = vmatpush1.msra.mxu0 0.0
  %243 = vmatprep.subr.mxu0 0.0
  %244 = vmatpush1.msra.mxu0 0.0
  %245 = vmatprep.subr.mxu0 0.0
  %246 = vmatpush1.msra.mxu0 0.0
  %247 = vmatprep.subr.mxu0 0.0
  %248 = vmatpush1.msra.mxu0 0.0
  %249 = vmatprep.subr.mxu0 0.0
  %250 = vmatpush1.msra.mxu0 0.0
  %251 = vmatprep.subr.mxu0 0.0
  %252 = vmatpush1.msra.mxu0 0.0
  %253 = vmatprep.subr.mxu0 0.0
  %254 = vmatpush1.msra.mxu0 0.0
  %255 = vmatprep.subr.mxu0 0.0
  %256 = vmatpush1.msra.mxu0 0.0
  %257 = vmatprep.subr.mxu0 0.0
  %258 = vmatpush1.msra.mxu0 0.0
  %259 = vmatprep.subr.mxu0 0.0
  %260 = vmatpush1.msra.mxu0 0.0
  %261 = vmatprep.subr.mxu0 0.0
  %262 = vmatpush1.msra.mxu0 0.0
  %263 = vmatprep.subr.mxu0 0.0
  %264 = vmatpush1.msra.mxu0 0.0
  %265 = vmatprep.subr.mxu0 0.0
  %266 = vmatpush1.msra.mxu0 0.0
  %267 = vmatprep.subr.mxu0 0.0
  %268 = vmatpush1.msra.mxu0 0.0
  %269 = vmatprep.subr.mxu0 0.0
  %270 = vmatpush1.msra.mxu0 0.0
  %271 = vmatprep.subr.mxu0 0.0
  %272 = vmatpush1.msra.mxu0 0.0
  %273 = vmatprep.subr.mxu0 0.0
  %274 = vmatpush1.msra.mxu0 0.0
  %275 = vmatprep.subr.mxu0 0.0
  %276 = vmatpush1.msra.mxu0 0.0
  %277 = vmatprep.subr.mxu0 0.0
  %278 = vmatpush1.msra.mxu0 0.0
  %279 = vmatprep.subr.mxu0 0.0
  %280 = vmatpush1.msra.mxu0 0.0
  %281 = vmatprep.subr.mxu0 0.0
  %282 = vmatpush1.msra.mxu0 0.0
  %283 = vmatprep.subr.mxu0 0.0
  %284 = vmatpush1.msra.mxu0 0.0
  %285 = vmatprep.mubr.f32.mxu0 0.0
  %286 = vmatmul.mubr.f32.gmra.mrb[0].mxu0 %v219
  %v287 = vpop.f32.mrb[0].mxu0
  %v288 = vadd.f32 %v215, %v287
  %v289 = vpop.f32.mrb[0].mxu0
  %290 = vdwg.mxu0
  %v291 = vld [vmem:[%s7] sm:$0xff]
  %v292 = vld [vmem:[%s7 + $0x8] sm:$0xff]
  %v293 = vld [vmem:[%s8] sm:$0x1]
  %v295 = vlaneseq
  %v296 = vshrl.u32 %v295, 7
  %v297 = vsub.s32 0, %v296
  %v298 = vrot.slane %v293, %v297
  %vm300 = vcmask 130048
  %v302 = vsel %vm300, %v288, 0
  %304 = vmatprep.subr.mxu0 0.0
  %305 = vmatpush1.msra.mxu0 %v291
  %306 = vmatprep.subr.mxu0 0.0
  %307 = vmatpush1.msra.mxu0 %v292
  %308 = vmatprep.subr.mxu0 0.0
  %309 = vmatpush1.msra.mxu0 0.0
  %310 = vmatprep.subr.mxu0 0.0
  %311 = vmatpush1.msra.mxu0 0.0
  %312 = vmatprep.subr.mxu0 0.0
  %313 = vmatpush1.msra.mxu0 0.0
  %314 = vmatprep.subr.mxu0 0.0
  %315 = vmatpush1.msra.mxu0 0.0
  %316 = vmatprep.subr.mxu0 0.0
  %317 = vmatpush1.msra.mxu0 0.0
  %318 = vmatprep.subr.mxu0 0.0
  %319 = vmatpush1.msra.mxu0 0.0
  %320 = vmatprep.subr.mxu0 0.0
  %321 = vmatpush1.msra.mxu0 0.0
  %322 = vmatprep.subr.mxu0 0.0
  %323 = vmatpush1.msra.mxu0 0.0
  %324 = vmatprep.subr.mxu0 0.0
  %325 = vmatpush1.msra.mxu0 0.0
  %326 = vmatprep.subr.mxu0 0.0
  %327 = vmatpush1.msra.mxu0 0.0
  %328 = vmatprep.subr.mxu0 0.0
  %329 = vmatpush1.msra.mxu0 0.0
  %330 = vmatprep.subr.mxu0 0.0
  %331 = vmatpush1.msra.mxu0 0.0
  %332 = vmatprep.subr.mxu0 0.0
  %333 = vmatpush1.msra.mxu0 0.0
  %334 = vmatprep.subr.mxu0 0.0
  %335 = vmatpush1.msra.mxu0 0.0
  %336 = vmatprep.subr.mxu0 0.0
  %337 = vmatpush1.msra.mxu0 0.0
  %338 = vmatprep.subr.mxu0 0.0
  %339 = vmatpush1.msra.mxu0 0.0
  %340 = vmatprep.subr.mxu0 0.0
  %341 = vmatpush1.msra.mxu0 0.0
  %342 = vmatprep.subr.mxu0 0.0
  %343 = vmatpush1.msra.mxu0 0.0
  %344 = vmatprep.subr.mxu0 0.0
  %345 = vmatpush1.msra.mxu0 0.0
  %346 = vmatprep.subr.mxu0 0.0
  %347 = vmatpush1.msra.mxu0 0.0
  %348 = vmatprep.subr.mxu0 0.0
  %349 = vmatpush1.msra.mxu0 0.0
  %350 = vmatprep.subr.mxu0 0.0
  %351 = vmatpush1.msra.mxu0 0.0
  %352 = vmatprep.subr.mxu0 0.0
  %353 = vmatpush1.msra.mxu0 0.0
  %354 = vmatprep.subr.mxu0 0.0
  %355 = vmatpush1.msra.mxu0 0.0
  %356 = vmatprep.subr.mxu0 0.0
  %357 = vmatpush1.msra.mxu0 0.0
  %358 = vmatprep.subr.mxu0 0.0
  %359 = vmatpush1.msra.mxu0 0.0
  %360 = vmatprep.subr.mxu0 0.0
  %361 = vmatpush1.msra.mxu0 0.0
  %362 = vmatprep.subr.mxu0 0.0
  %363 = vmatpush1.msra.mxu0 0.0
  %364 = vmatprep.subr.mxu0 0.0
  %365 = vmatpush1.msra.mxu0 0.0
  %366 = vmatprep.subr.mxu0 0.0
  %367 = vmatpush1.msra.mxu0 0.0
  %368 = vmatprep.mubr.f32.mxu0 0.0
  %369 = vmatmul.mubr.f32.gmra.mrb[0].mxu0 %v302
  %v370 = vpop.f32.mrb[0].mxu0
  %v371 = vadd.f32 %v298, %v370
  %v372 = vpop.f32.mrb[0].mxu0
  %373 = vdwg.mxu0
  %v374 = vxor.u32 %v371, 2147483648
  %v375 = vmul.f32 %v374, 1.442695
  %v376 = vpow.pop %v375
  %v377 = vadd.f32 %v376, 1.0
  %v378 = vrcp.pop %v377
  %v379 = vmul.f32 1.0, %v378
  %380 = vst [vmem:[%s9] sm:$0xff] %v379
  // Predicated region
  $region38: #{mymodel_forward.1} parent=0 // pred_check
    _
  $region39: #{mymodel_forward.1} parent=0 // pred_check_branch
    %382 = sbr.rel (0) target = $region41
  $region40: #{mymodel_forward.1} parent=0 // pred_region
    _
  $region41: #{mymodel_forward.1} parent=0 // pred_fallthru
    _
  // Predicated region
  $region42: #{mymodel_forward.1} parent=0 // pred_check
    _
  $region43: #{mymodel_forward.1} parent=0 // pred_check_branch
    %384 = sbr.rel (0) target = $region45
  $region44: #{mymodel_forward.1} parent=0 // pred_region
    _
  $region45: #{mymodel_forward.1} parent=0 // pred_fallthru
    _

</llo_original>
